<compile_context>
chip_gen: v6e
topology: v6e:2x2x1
jax: 0.10.0
libtpu: 0.0.40
codegen_flags: <defaults>
</compile_context>

<pallas_src>
import math
from functools import partial

import jax
import jax.numpy as jnp
from jax.experimental import pallas as pl
from jax.experimental.pallas import tpu as pltpu


def _round_down_to(n, m):
    return (n // m) * m


def _tpu_budget():
    """Generation-aware (vmem_limit_bytes, tile_budget_bytes, bf16_compute_ok)."""
    vmem_cap = None
    try:
        info = pltpu.get_tpu_info()
        vmem_cap = getattr(info, "vmem_capacity_bytes", None)
    except Exception:
        vmem_cap = None
    if not vmem_cap:
        vmem_cap = 64 * 1024 * 1024              # conservative: v7x per-core physical VMEM
    # Scoped limit: half of physical, capped at 64 MiB (v5e/v6e -> 64 MiB, v7x -> 32 MiB).
    vmem_limit = int(min(vmem_cap // 2, 64 * 1024 * 1024))
    # Double-buffered in + out = 4 tiles; keep that well under the scoped limit.
    tile_budget = max(1 << 20, vmem_limit // 8)  # v5e/v6e: 8 MiB, v7x: 4 MiB
    bf16_ok = True
    try:
        kind = jax.devices()[0].device_kind.lower()
        # v5e and older chips have no bf16 VPU/EUP -> keep f32 compute there.
        if any(t in kind for t in ("v5 lite", "v5lite", "v5e", "v4", "v3", "v2")):
            bf16_ok = False
    except Exception:
        bf16_ok = False
    return vmem_limit, tile_budget, bf16_ok


def _dyt_affine_kernel(alpha_ref, w_ref, b_ref, x_ref, o_ref, *, compute_dtype):
    """y = tanh(alpha * x) * w + b   (w/b broadcast against the x tile).

    alpha_ref: (1,) f32 in SMEM
    w_ref/b_ref: (1, W) or (tm, 1) VMEM slab broadcasting against x
    x_ref/o_ref: (tm, W) VMEM tile
    """
    a = alpha_ref[0].astype(compute_dtype)
    y = jnp.tanh(a * x_ref[...].astype(compute_dtype))
    o_ref[...] = (y * w_ref[...].astype(compute_dtype)
                  + b_ref[...].astype(compute_dtype)).astype(o_ref.dtype)


def _lane_dense_width(N, C):
    """Width W: multiple of C, divisor of N (pad-free), ideally multiple of 128, 512..4096."""
    lcm = C * 128 // math.gcd(C, 128)
    if lcm <= 4096 and N % lcm == 0:
        W = lcm
        while W < 512 and (N % (2 * W) == 0) and 2 * W <= 4096:
            W *= 2
        return W
    # Awkward shapes: grow from C by factors of 2 that still divide N (keeps reshape pad-free).
    W = C
    while W < 512 and (N % (2 * W) == 0):
        W *= 2
    return W


# ----------------------------- channels_last path -----------------------------
def dynamic_tanh_channels_last(x, alpha, weight, bias):
    """x: (..., C), weight/bias: (C,). Returns same shape/dtype as x."""
    orig_shape = x.shape
    C = orig_shape[-1]
    N = x.size
    itemsize = x.dtype.itemsize

    vmem_limit, tile_budget, bf16_ok = _tpu_budget()
    compute_dtype = jnp.bfloat16 if (x.dtype == jnp.bfloat16 and bf16_ok) else jnp.float32

    W = _lane_dense_width(N, C)          # divides N: no pad / unpad HBM passes
    reps = W // C
    rows = N // W
    x2 = x.reshape(rows, W)

    # Row tile from the byte budget; ragged last block handled by Pallas edge masking.
    if rows <= 8:
        tm = rows
    else:
        tm = min(rows, max(8, tile_budget // max(W * itemsize, 1)))
        tm = max(8, _round_down_to(tm, 8))
    grid = pl.cdiv(rows, tm)

    alpha_s = jnp.asarray(alpha, dtype=jnp.float32).reshape(1)
    w_slab = jnp.tile(jnp.asarray(weight).reshape(-1), reps).reshape(1, W)
    b_slab = jnp.tile(jnp.asarray(bias).reshape(-1), reps).reshape(1, W)

    cost = pl.CostEstimate(flops=3 * N, transcendentals=N,
                           bytes_accessed=2 * N * itemsize)

    out = pl.pallas_call(
        partial(_dyt_affine_kernel, compute_dtype=compute_dtype),
        out_shape=jax.ShapeDtypeStruct((rows, W), x.dtype),
        grid=(grid,),
        in_specs=[
            pl.BlockSpec(memory_space=pltpu.MemorySpace.SMEM),   # alpha scalar
            pl.BlockSpec((1, W), lambda i: (0, 0)),              # weight slab (resident)
            pl.BlockSpec((1, W), lambda i: (0, 0)),              # bias slab (resident)
            pl.BlockSpec((tm, W), lambda i: (i, 0)),             # x tile
        ],
        out_specs=pl.BlockSpec((tm, W), lambda i: (i, 0)),
        compiler_params=pltpu.CompilerParams(
            dimension_semantics=("parallel",),
            vmem_limit_bytes=vmem_limit),
        cost_estimate=cost,
    )(alpha_s, w_slab, b_slab, x2)

    return out.reshape(orig_shape)


# ---------------------------- channels_first path -----------------------------
def dynamic_tanh_channels_first(x, alpha, weight, bias):
    """x: (B, C, L), weight/bias: (C,). Matches weight.unsqueeze(-1) broadcasting."""
    B, C, L = x.shape
    N = x.size
    itemsize = x.dtype.itemsize
    rows = B * C

    vmem_limit, tile_budget, bf16_ok = _tpu_budget()
    compute_dtype = jnp.bfloat16 if (x.dtype == jnp.bfloat16 and bf16_ok) else jnp.float32

    x2 = x.reshape(rows, L)                              # L on the lane axis
    alpha_s = jnp.asarray(alpha, dtype=jnp.float32).reshape(1)
    w_rows = jnp.tile(jnp.asarray(weight).reshape(-1), B).reshape(rows, 1)   # row = b*C + c
    b_rows = jnp.tile(jnp.asarray(bias).reshape(-1), B).reshape(rows, 1)

    # Row tile from the byte budget (1-8 MiB x tiles); ragged last block via edge masking.
    if rows <= 8:
        tm = rows
    else:
        tm = min(rows, max(8, tile_budget // max(L * itemsize, 1)))
        tm = max(8, _round_down_to(tm, 8))
    grid = pl.cdiv(rows, tm)

    cost = pl.CostEstimate(flops=3 * N, transcendentals=N,
                           bytes_accessed=2 * N * itemsize)

    out = pl.pallas_call(
        partial(_dyt_affine_kernel, compute_dtype=compute_dtype),
        out_shape=jax.ShapeDtypeStruct((rows, L), x.dtype),
        grid=(grid,),
        in_specs=[
            pl.BlockSpec(memory_space=pltpu.MemorySpace.SMEM),   # alpha scalar
            pl.BlockSpec((tm, 1), lambda i: (i, 0)),             # per-row weight
            pl.BlockSpec((tm, 1), lambda i: (i, 0)),             # per-row bias
            pl.BlockSpec((tm, L), lambda i: (i, 0)),             # x tile
        ],
        out_specs=pl.BlockSpec((tm, L), lambda i: (i, 0)),
        compiler_params=pltpu.CompilerParams(
            dimension_semantics=("parallel",),
            vmem_limit_bytes=vmem_limit),
        cost_estimate=cost,
    )(alpha_s, w_rows, b_rows, x2)

    return out.reshape(B, C, L)


if __name__ == "__main__":
    key = jax.random.PRNGKey(0)
    B, C, H, W_sp = 2, 4, 16, 16
    alpha_init_value = 0.5

    # Deterministic parameter init mirroring the nn.Parameter inits, perturbed so the
    # affine part is actually exercised.
    alpha = jnp.array([alpha_init_value], dtype=jnp.float32)     # torch.ones(1) * 0.5
    kw, kb, kx = jax.random.split(key, 3)
    weight = jnp.ones((C,), dtype=jnp.float32) + 0.1 * jax.random.normal(kw, (C,), jnp.float32)
    bias = jnp.zeros((C,), dtype=jnp.float32) + 0.1 * jax.random.normal(kb, (C,), jnp.float32)

    # ---- channels_last=True path: input (..., C) i.e. NHWC feature map ----
    x_nhwc = jax.random.normal(kx, (B, H, W_sp, C), dtype=jnp.float32)
    y_cl = dynamic_tanh_channels_last(x_nhwc, alpha, weight, bias)
    jax.block_until_ready(y_cl)
    y_cl_ref = jnp.tanh(alpha[0] * x_nhwc) * weight + bias
    assert jnp.allclose(y_cl, y_cl_ref, atol=1e-5, rtol=1e-5)

    # ---- channels_last=False path: 3D input (B, C, L) with L = H*W ----
    x_ncl = jnp.transpose(x_nhwc, (0, 3, 1, 2)).reshape(B, C, H * W_sp)
    y_cf = dynamic_tanh_channels_first(x_ncl, alpha, weight, bias)
    jax.block_until_ready(y_cf)
    y_cf_ref = jnp.tanh(alpha[0] * x_ncl) * weight[:, None] + bias[:, None]
    assert jnp.allclose(y_cf, y_cf_ref, atol=1e-5, rtol=1e-5)

    print("KERNEL_OK")
</pallas_src>

<mosaic_0001>
module attributes {stable_mosaic.version = 11 : i64} {
  func.func @_dyt_affine_kernel(%arg0: i32, %arg1: memref<1xf32, #tpu.memory_space<smem>>, %arg2: memref<1x512xf32, #tpu.memory_space<vmem>>, %arg3: memref<1x512xf32, #tpu.memory_space<vmem>>, %arg4: memref<4x512xf32, #tpu.memory_space<vmem>>, %arg5: memref<4x512xf32, #tpu.memory_space<vmem>>) attributes {dimension_semantics = [#tpu.dimension_semantics<parallel>], iteration_bounds = array<i64: 1>, scalar_prefetch = 0 : i64, scratch_operands = 0 : i64, tpu.core_type = #tpu.core_type<tc>, window_params = [{transform_indices = @transform_0, window_bounds = array<i64: 1>}, {pipeline_mode = #tpu.pipeline_mode<synchronous>, transform_indices = @transform_1, window_bounds = array<i64: 1, 512>}, {pipeline_mode = #tpu.pipeline_mode<synchronous>, transform_indices = @transform_2, window_bounds = array<i64: 1, 512>}, {transform_indices = @transform_3, window_bounds = array<i64: 4, 512>}, {transform_indices = @transform_4, window_bounds = array<i64: 4, 512>}]} {
    %c0 = arith.constant 0 : index
    %0 = memref.load %arg1[%c0] : memref<1xf32, #tpu.memory_space<smem>>
    %c0_0 = arith.constant 0 : index
    %c0_1 = arith.constant 0 : index
    %1 = vector.load %arg4[%c0_0, %c0_1] : memref<4x512xf32, #tpu.memory_space<vmem>>, vector<4x512xf32>
    %2 = vector.broadcast %0 : f32 to vector<4x512xf32>
    %3 = arith.mulf %2, %1 : vector<4x512xf32>
    %4 = math.tanh %3 : vector<4x512xf32>
    %c0_2 = arith.constant 0 : index
    %c0_3 = arith.constant 0 : index
    %5 = vector.load %arg2[%c0_2, %c0_3] : memref<1x512xf32, #tpu.memory_space<vmem>>, vector<1x512xf32>
    %6 = vector.broadcast %5 : vector<1x512xf32> to vector<4x512xf32>
    %7 = arith.mulf %4, %6 : vector<4x512xf32>
    %c0_4 = arith.constant 0 : index
    %c0_5 = arith.constant 0 : index
    %8 = vector.load %arg3[%c0_4, %c0_5] : memref<1x512xf32, #tpu.memory_space<vmem>>, vector<1x512xf32>
    %9 = vector.broadcast %8 : vector<1x512xf32> to vector<4x512xf32>
    %10 = arith.addf %7, %9 : vector<4x512xf32>
    %c0_6 = arith.constant 0 : index
    %c0_7 = arith.constant 0 : index
    %11 = vector.load %arg5[%c0_6, %c0_7] : memref<4x512xf32, #tpu.memory_space<vmem>>, vector<4x512xf32>
    tpu.vector_store %arg5[%c0_6, %c0_7], %10 {strides = array<i32>} : memref<4x512xf32, #tpu.memory_space<vmem>>, vector<4x512xf32>,
    return
  }
  func.func @transform_0(%arg0: i32) -> i32 {
    %c0_i32 = arith.constant 0 : i32
    %c0_i32_0 = arith.constant 0 : i32
    return %c0_i32 : i32
  }
  func.func @transform_1(%arg0: i32) -> (i32, i32) {
    %c0_i32 = arith.constant 0 : i32
    %c0_i32_0 = arith.constant 0 : i32
    %c0_i32_1 = arith.constant 0 : i32
    return %c0_i32, %c0_i32_0 : i32, i32
  }
  func.func @transform_2(%arg0: i32) -> (i32, i32) {
    %c0_i32 = arith.constant 0 : i32
    %c0_i32_0 = arith.constant 0 : i32
    %c0_i32_1 = arith.constant 0 : i32
    return %c0_i32, %c0_i32_0 : i32, i32
  }
  func.func @transform_3(%arg0: i32) -> (i32, i32) {
    %c0_i32 = arith.constant 0 : i32
    %c0_i32_0 = arith.constant 0 : i32
    return %arg0, %c0_i32 : i32, i32
  }
  func.func @transform_4(%arg0: i32) -> (i32, i32) {
    %c0_i32 = arith.constant 0 : i32
    %c0_i32_0 = arith.constant 0 : i32
    return %arg0, %c0_i32 : i32, i32
  }
}

</mosaic_0001>

<llo_original>
// kernel: tpu_custom_call.1
$region0: #{tpu_custom_call.1}
  #allocation0 [shape = 'u32[]', space=smem, size = 0x4, offset = 0x4, fixed_abs, tag = 'smem constant byte address 0x4 - core index']
  #allocation1 [shape = 'u32[144,128]{1,0:T(1,128)}', space=vmem, size = 0x12000, scoped, tag = 'internal scratch']
  #allocation2 [shape = 'f32[1]{0:T(128)S(6)}', space=smem, size = 0x200, scoped, tag = 'scoped memory for tpu_custom_call.1']
  %s0 = inlined_call_operand.<no memory space> [shape: f32[1], index: 0, kind: input, shape index: {}]
  %s1 = inlined_call_operand.hbm [shape: f32[1,512], index: 1, kind: input, shape index: {}]
  %s2 = inlined_call_operand.hbm [shape: f32[1,512], index: 2, kind: input, shape index: {}]
  %s3 = inlined_call_operand.hbm [shape: f32[4,512], index: 3, kind: input, shape index: {}]
  %s4 = inlined_call_operand.hbm [shape: f32[4,512], index: 4, kind: output, shape index: {}]
  %s5 = sld [smem:[#allocation0]]
  $region38: #{tpu_custom_call.1} parent=0
    _
  %s7 = ssub.s32 1, %s5
  %s8 = scalar_select 0, %s7, %s5
  %9 = sst [smem:[#allocation2]] %s0
  $region1: #{tpu_custom_call.1} parent=0
    #allocation3 [shape = 'u8[2048]{0}', space=vmem, size = 0x800, scoped, tag = 'input window, operand 1, single buffered']
    #allocation4 [shape = 's32[1]{0}', space=sflag, size = 0x4, scoped, tag = 'scoped memory for tpu_custom_call.1']
    #allocation5 [shape = 's32[1]{0}', space=sflag, size = 0x4, scoped, tag = 'scoped memory for tpu_custom_call.1']
    #allocation6 [shape = 'u8[2048]{0}', space=vmem, size = 0x800, scoped, tag = 'input window, operand 2, single buffered']
    #allocation7 [shape = 's32[1]{0}', space=sflag, size = 0x4, scoped, tag = 'scoped memory for tpu_custom_call.1']
    #allocation8 [shape = 'u8[8192]{0}', space=vmem, size = 0x2000, scoped, tag = 'input window, operand 3, single buffered']
    #allocation9 [shape = 'u8[8192]{0}', space=vmem, size = 0x2000, scoped, tag = 'output window, operand 0, single buffered']
    %10 = vsyncpa [#allocation4], 0
    %11 = vsyncpa [#allocation7], 0
    %12 = vsyncpa [#allocation5], 0
    // Predicated region
    $region2: #{tpu_custom_call.1} parent=1 // pred_check
      _
    $region3: #{tpu_custom_call.1} parent=1 // pred_check_branch
      %14 = sbr.rel (0) target = $region5
    $region4: #{tpu_custom_call.1} parent=1 // pred_region
      _
    $region5: #{tpu_custom_call.1} parent=1 // pred_fallthru
      _
    // Predicated region
    $region6: #{tpu_custom_call.1} parent=1 // pred_check
      _
    $region7: #{tpu_custom_call.1} parent=1 // pred_check_branch
      %16 = sbr.rel (0) target = $region9
    $region8: #{tpu_custom_call.1} parent=1 // pred_region
      %s18 = ssub.s32 64, 64
      %19 = vsyncadd [#allocation4], %s18
      %s21 = sshll.u32 [#allocation3], 4
      %s22 = int_to_ptr.vmem [resolvable:$true] %s21
      %24 = dma.hbm_to_vmem [thread:$0]  %s1, 64, %s22, [#allocation4]
    $region9: #{tpu_custom_call.1} parent=1 // pred_fallthru
      _
    // Predicated region
    $region10: #{tpu_custom_call.1} parent=1 // pred_check
      _
    $region11: #{tpu_custom_call.1} parent=1 // pred_check_branch
      %26 = sbr.rel (0) target = $region13
    $region12: #{tpu_custom_call.1} parent=1 // pred_region
      %s28 = ssub.s32 64, 64
      %29 = vsyncadd [#allocation7], %s28
      %s31 = sshll.u32 [#allocation6], 4
      %s32 = int_to_ptr.vmem [resolvable:$true] %s31
      %34 = dma.hbm_to_vmem [thread:$0]  %s2, 64, %s32, [#allocation7]
    $region13: #{tpu_custom_call.1} parent=1 // pred_fallthru
      _
    // Predicated region
    $region14: #{tpu_custom_call.1} parent=1 // pred_check
      _
    $region15: #{tpu_custom_call.1} parent=1 // pred_check_branch
      %36 = sbr.rel (0) target = $region17
    $region16: #{tpu_custom_call.1} parent=1 // pred_region
      %s38 = ssub.s32 256, 256
      %39 = vsyncadd [#allocation7], %s38
      %s41 = sshll.u32 [#allocation8], 4
      %s42 = int_to_ptr.vmem [resolvable:$true] %s41
      %44 = dma.hbm_to_vmem [thread:$0]  %s3, 256, %s42, [#allocation7]
    $region17: #{tpu_custom_call.1} parent=1 // pred_fallthru
      _
    // Predicated region
    $region18: #{tpu_custom_call.1} parent=1 // pred_check
      _
    $region19: #{tpu_custom_call.1} parent=1 // pred_check_branch
      %46 = sbr.rel (0) target = $region21
    $region20: #{tpu_custom_call.1} parent=1 // pred_region
      %47 = dma.done [#allocation4], 64
    $region21: #{tpu_custom_call.1} parent=1 // pred_fallthru
      _
    // Predicated region
    $region22: #{tpu_custom_call.1} parent=1 // pred_check
      _
    $region23: #{tpu_custom_call.1} parent=1 // pred_check_branch
      %49 = sbr.rel (0) target = $region25
    $region24: #{tpu_custom_call.1} parent=1 // pred_region
      %50 = dma.done [#allocation7], 64
    $region25: #{tpu_custom_call.1} parent=1 // pred_fallthru
      _
    // Predicated region
    $region26: #{tpu_custom_call.1} parent=1 // pred_check
      _
    $region27: #{tpu_custom_call.1} parent=1 // pred_check_branch
      %52 = sbr.rel (0) target = $region29
    $region28: #{tpu_custom_call.1} parent=1 // pred_region
      %53 = dma.done [#allocation7], 256
    $region29: #{tpu_custom_call.1} parent=1 // pred_fallthru
      _
    %s54 = sld [smem:[#allocation2]]
    %v55 = vld [vmem:[#allocation8] sm:$0xff]
    %v56 = vld [vmem:[#allocation8 + $0x8] sm:$0xff]
    %v57 = vstv %s54
    %v58 = vmul.f32 %v57, %v55
    %v59 = vmul.f32 %v57, %v56
    %v60 = vtanh.pop %v58
    %v61 = vtanh.pop %v59
    %v62 = vld [vmem:[#allocation3] sm:$0xf]
    %v64 = vlaneseq
    %v65 = vshrl.u32 %v64, 7
    %v66 = vsub.s32 0, %v65
    %v67 = vrot.slane %v62, %v66
    %v68 = vlaneseq
    %v69 = vshrl.u32 %v68, 7
    %v70 = vsub.s32 1, %v69
    %v71 = vrot.slane %v62, %v70
    %v72 = vlaneseq
    %v73 = vshrl.u32 %v72, 7
    %v74 = vsub.s32 2, %v73
    %v75 = vrot.slane %v62, %v74
    %v76 = vlaneseq
    %v77 = vshrl.u32 %v76, 7
    %v78 = vsub.s32 3, %v77
    %v79 = vrot.slane %v62, %v78
    %v80 = vcombine.low %v67, %v71
    %v81 = vcombine.low %v75, %v79
    %v84 = vmul.f32 %v60, %v80
    %v85 = vmul.f32 %v61, %v81
    %v86 = vld [vmem:[#allocation6] sm:$0xf]
    %v88 = vlaneseq
    %v89 = vshrl.u32 %v88, 7
    %v90 = vsub.s32 0, %v89
    %v91 = vrot.slane %v86, %v90
    %v92 = vlaneseq
    %v93 = vshrl.u32 %v92, 7
    %v94 = vsub.s32 1, %v93
    %v95 = vrot.slane %v86, %v94
    %v96 = vlaneseq
    %v97 = vshrl.u32 %v96, 7
    %v98 = vsub.s32 2, %v97
    %v99 = vrot.slane %v86, %v98
    %v100 = vlaneseq
    %v101 = vshrl.u32 %v100, 7
    %v102 = vsub.s32 3, %v101
    %v103 = vrot.slane %v86, %v102
    %v104 = vcombine.low %v91, %v95
    %v105 = vcombine.low %v99, %v103
    %v108 = vadd.f32 %v84, %v104
    %v109 = vadd.f32 %v85, %v105
    %110 = vst [vmem:[#allocation9] sm:$0xff] %v108
    %111 = vst [vmem:[#allocation9 + $0x8] sm:$0xff] %v109
    // Predicated region
    $region30: #{tpu_custom_call.1} parent=1 // pred_check
      _
    $region31: #{tpu_custom_call.1} parent=1 // pred_check_branch
      %113 = sbr.rel (0) target = $region33
    $region32: #{tpu_custom_call.1} parent=1 // pred_region
      %s115 = ssub.s32 256, 256
      %116 = vsyncadd [#allocation5], %s115
      %s118 = sshll.u32 [#allocation9], 4
      %s119 = int_to_ptr.vmem [resolvable:$true] %s118
      %121 = dma.vmem_to_hbm [thread:$0]  %s119, 256, %s4, [#allocation5]
    $region33: #{tpu_custom_call.1} parent=1 // pred_fallthru
      _
    // Predicated region
    $region34: #{tpu_custom_call.1} parent=1 // pred_check
      _
    $region35: #{tpu_custom_call.1} parent=1 // pred_check_branch
      %123 = sbr.rel (0) target = $region37
    $region36: #{tpu_custom_call.1} parent=1 // pred_region
      %124 = dma.done [#allocation5], 256
    $region37: #{tpu_custom_call.1} parent=1 // pred_fallthru
      _
    %125 = vsyncpa [#allocation4], 1
    %126 = vsyncpa [#allocation7], 1
    %127 = vsyncpa [#allocation5], 1

</llo_original>
